<compile_context>
chip_gen: v5e
topology: v5e:2x2
jax: 0.10.0
libtpu: 0.0.40
codegen_flags: <defaults>
</compile_context>

<pallas_src>
import functools
import math

import numpy as np
import jax
import jax.numpy as jnp
from jax.experimental import pallas as pl
from jax.experimental.pallas import tpu as pltpu


def _penc1d_kernel(const_ref, o_ref, *, rows_per_tile: int):
    """Write one (rows_per_tile, lane_dim) tile of the lane-dense encoding.

    const_ref (f32, shape (2, lane_dim)):
      row 0: group * inv_freq[k // 2]              (per-lane frequency, pre-scaled)
      row 1: (l // channels) * inv_freq + phase    (per-lane constant offset)
    For grid tile i, row r, lane l the stored value is
      sin( (i*rows_per_tile + r) * const[0, l] + const[1, l] )
    which equals sin(position * inv_freq + phase) with
      position = (i*rows_per_tile + r)*group + l//channels,
      phase    = (k odd) * pi/2    (cos(t) == sin(t + pi/2)),
    reproducing the interleaved sin/cos of the reference module.
    """
    R = o_ref.shape[0]
    i = pl.program_id(0)

    freq = const_ref[0:1, :]                              # (1, L)
    base = const_ref[1:2, :]                              # (1, L)

    # (R, 1) row index; int iota (exact) + one cheap cast of R values, then a
    # single broadcast FMA over the (R, L) tile and one transcendental/element.
    row = jax.lax.broadcasted_iota(jnp.int32, (R, 1), 0) + i * rows_per_tile
    ang = row.astype(jnp.float32) * freq + base           # (R,1)x(1,L) outer FMA
    o_ref[...] = jnp.sin(ang).astype(o_ref.dtype)


def _choose_group(channels: int) -> int:
    """Positions packed per output row so lane_dim is a multiple of 128."""
    if channels % 128 == 0:
        return 1
    g = math.lcm(128, channels) // channels
    if g * channels > (1 << 16):      # pathological channel counts: keep rows sane
        return 1                      # (lane dim still >= 128 here, masking is minor)
    return g


def _tile_rows(n_rows: int, lane_dim: int, itemsize: int):
    """Pick (rows_per_tile, num_tiles) with rows_per_tile*num_tiles >= n_rows.

    rows_per_tile is a multiple of the dtype's sublane packing, each output
    buffer stays <= ~4 MiB, and non-trivial slabs get an even tile count >= 2
    (v7x megacore).  No ragged tail: the caller pads the output row count.
    """
    sub = max(8, 32 // itemsize)                     # 8 f32 / 16 bf16 / 32 int8
    up = lambda a, m: -(-a // m) * m
    if n_rows * lane_dim <= (256 << 10):             # tiny slab: one tile, no grid overhead
        return up(n_rows, sub), 1
    budget_elems = (4 << 20) // itemsize             # ~4 MiB per output buffer
    num_tiles = 2
    while True:
        rpt = up(-(-n_rows // num_tiles), sub)
        if rpt * lane_dim <= budget_elems or rpt == sub:
            return rpt, num_tiles
        num_tiles += 2


def _lane_constants(channels: int, group: int) -> np.ndarray:
    """(2, group*channels) f32 per-lane constants (host-side, compile-time)."""
    L = group * channels
    lane = np.arange(L)
    k = lane % channels                                        # channel index
    q = (lane // channels).astype(np.float64)                  # position offset in row
    inv_freq = np.exp(((k // 2) * 2).astype(np.float64) *
                      (-math.log(1000.0) / float(channels)))   # 1000^(-2j/channels)
    phase = (k % 2).astype(np.float64) * (math.pi / 2.0)       # cos == sin(.+pi/2)
    freq_row = group * inv_freq
    base_row = q * inv_freq + phase
    return np.stack([freq_row, base_row], axis=0).astype(np.float32)


def _positional_encoding_slab(x: int, orig_ch: int, dtype) -> jax.Array:
    """The (x, orig_ch) positional-encoding slab (batch-independent)."""
    channels = int(math.ceil(orig_ch / 2) * 2)        # padded to even, like the module
    group = _choose_group(channels)
    lane_dim = group * channels
    itemsize = jnp.dtype(dtype).itemsize

    n_rows = -(-x // group)                           # positions needed, in packed rows
    rows_per_tile, num_tiles = _tile_rows(n_rows, lane_dim, itemsize)
    padded_rows = rows_per_tile * num_tiles           # full tiles only; slice later

    const = jnp.asarray(_lane_constants(channels, group))     # (2, lane_dim) f32

    emb2d = pl.pallas_call(
        functools.partial(_penc1d_kernel, rows_per_tile=rows_per_tile),
        out_shape=jax.ShapeDtypeStruct((padded_rows, lane_dim), dtype),
        grid=(num_tiles,),
        in_specs=[pl.BlockSpec((2, lane_dim), lambda i: (0, 0))],
        out_specs=pl.BlockSpec((rows_per_tile, lane_dim), lambda i: (i, 0)),
        compiler_params=pltpu.CompilerParams(
            dimension_semantics=("parallel",)),       # shards tiles across v7x's 2 TCs
        cost_estimate=pl.CostEstimate(
            flops=2 * padded_rows * lane_dim,                       # one FMA / element
            transcendentals=padded_rows * lane_dim,                 # one sin / element
            bytes_accessed=padded_rows * lane_dim * itemsize + 2 * lane_dim * 4),
    )(const)

    # Free row-major reshape: each lane-dense row packs `group` consecutive
    # positions; slice off the row/channel padding.
    emb = emb2d.reshape(padded_rows * group, channels)
    return emb[:x, :orig_ch]


def positional_encoding_1d(tensor: jax.Array) -> jax.Array:
    """JAX/Pallas equivalent of PositionalEncoding1D(orig_ch)(tensor)."""
    if tensor.ndim != 3:
        raise RuntimeError("The input tensor has to be 3d!")
    B, X, orig_ch = tensor.shape
    emb = _positional_encoding_slab(X, orig_ch, tensor.dtype)
    # Module contract is a (B, X, ch) result.  Under jit with a consumer the
    # broadcast fuses; callers that only add the encoding should prefer the
    # un-broadcast slab (_positional_encoding_slab) to avoid B-way HBM traffic.
    return jnp.broadcast_to(emb[None, :, :], (B, X, orig_ch))
    # TODO(synk): the PyTorch module's `cached_penc` host-side memoization is a
    # Python-level cache, not an op; leave caching to the caller / jit.


def _reference_numpy(shape, dtype):
    """Pure numpy re-implementation of the PyTorch forward (base 1000, per spec)."""
    B, X, orig_ch = shape
    channels = int(np.ceil(orig_ch / 2) * 2)
    inv_freq = 1.0 / 1000 ** (np.arange(0, channels, 2, dtype=np.float32) / channels)
    pos_x = np.arange(X, dtype=np.float32)
    sin_inp = np.einsum("i,j->ij", pos_x, inv_freq)
    emb_x = np.stack((np.sin(sin_inp), np.cos(sin_inp)), axis=-1).reshape(X, channels)
    return np.broadcast_to(emb_x[None, :, :orig_ch], (B, X, orig_ch)).astype(dtype)


if __name__ == "__main__":
    key = jax.random.PRNGKey(0)
    k1, k2, k3 = jax.random.split(key, 3)

    # Primary example (module's 3-D forward): batch=2, x=16, ch=8.
    B, X, CH = 2, 16, 8
    x = jax.random.normal(k1, (B, X, CH), dtype=jnp.float32)
    out = jax.block_until_ready(positional_encoding_1d(x))
    assert out.shape == (B, X, CH) and out.dtype == x.dtype
    np.testing.assert_allclose(np.asarray(out), _reference_numpy((B, X, CH), np.float32),
                               rtol=1e-5, atol=1e-5)

    # Odd-channel case (pad-to-even + channel slice + heavy row padding path).
    B2, X2, CH2 = 2, 12, 5
    x2 = jax.random.normal(k2, (B2, X2, CH2), dtype=jnp.float32)
    out2 = jax.block_until_ready(positional_encoding_1d(x2))
    assert out2.shape == (B2, X2, CH2)
    np.testing.assert_allclose(np.asarray(out2), _reference_numpy((B2, X2, CH2), np.float32),
                               rtol=1e-5, atol=1e-5)

    # Moderate case: channels % 128 == 0 (group=1) and the multi-tile (even grid)
    # path.  Looser tolerance: angles reach ~X, so the f32 pi/2 phase add and
    # range reduction differ from numpy's cos at the few-1e-4 level.
    B3, X3, CH3 = 1, 4096, 128
    x3 = jax.random.normal(k3, (B3, X3, CH3), dtype=jnp.float32)
    out3 = jax.block_until_ready(positional_encoding_1d(x3))
    assert out3.shape == (B3, X3, CH3)
    np.testing.assert_allclose(np.asarray(out3), _reference_numpy((B3, X3, CH3), np.float32),
                               rtol=1e-3, atol=5e-3)

    print("KERNEL_OK")
</pallas_src>

<mosaic_0001>
module attributes {stable_mosaic.version = 11 : i64} {
  func.func @_penc1d_kernel(%arg0: i32, %arg1: memref<2x128xf32, #tpu.memory_space<vmem>>, %arg2: memref<8x128xf32, #tpu.memory_space<vmem>>) attributes {dimension_semantics = [#tpu.dimension_semantics<parallel>], iteration_bounds = array<i64: 1>, scalar_prefetch = 0 : i64, scratch_operands = 0 : i64, tpu.core_type = #tpu.core_type<tc>, window_params = [{pipeline_mode = #tpu.pipeline_mode<synchronous>, transform_indices = @transform_0, window_bounds = array<i64: 2, 128>}, {transform_indices = @transform_1, window_bounds = array<i64: 8, 128>}]} {
    %c0 = arith.constant 0 : index
    %c0_0 = arith.constant 0 : index
    %0 = vector.load %arg1[%c0, %c0_0] : memref<2x128xf32, #tpu.memory_space<vmem>>, vector<1x128xf32>
    %c1 = arith.constant 1 : index
    %c0_1 = arith.constant 0 : index
    %1 = vector.load %arg1[%c1, %c0_1] : memref<2x128xf32, #tpu.memory_space<vmem>>, vector<1x128xf32>
    %2 = tpu.iota {dimensions = array<i32: 0>} : vector<8x1xi32>
    %c8_i32 = arith.constant 8 : i32
    %3 = arith.muli %arg0, %c8_i32 : i32
    %4 = vector.broadcast %3 : i32 to vector<8x1xi32>
    %5 = arith.addi %2, %4 : vector<8x1xi32>
    %6 = arith.sitofp %5 : vector<8x1xi32> to vector<8x1xf32>
    %7 = vector.broadcast %6 : vector<8x1xf32> to vector<8x128xf32>
    %8 = vector.broadcast %0 : vector<1x128xf32> to vector<8x128xf32>
    %9 = arith.mulf %7, %8 : vector<8x128xf32>
    %10 = vector.broadcast %1 : vector<1x128xf32> to vector<8x128xf32>
    %11 = arith.addf %9, %10 : vector<8x128xf32>
    %12 = math.sin %11 : vector<8x128xf32>
    %c0_2 = arith.constant 0 : index
    %c0_3 = arith.constant 0 : index
    %13 = vector.load %arg2[%c0_2, %c0_3] : memref<8x128xf32, #tpu.memory_space<vmem>>, vector<8x128xf32>
    tpu.vector_store %arg2[%c0_2, %c0_3], %12 {strides = array<i32>} : memref<8x128xf32, #tpu.memory_space<vmem>>, vector<8x128xf32>,
    return
  }
  func.func @transform_0(%arg0: i32) -> (i32, i32) {
    %c0_i32 = arith.constant 0 : i32
    %c0_i32_0 = arith.constant 0 : i32
    %c0_i32_1 = arith.constant 0 : i32
    return %c0_i32, %c0_i32_0 : i32, i32
  }
  func.func @transform_1(%arg0: i32) -> (i32, i32) {
    %c0_i32 = arith.constant 0 : i32
    %c0_i32_0 = arith.constant 0 : i32
    return %arg0, %c0_i32 : i32, i32
  }
}

</mosaic_0001>

<llo_original>
// kernel: tpu_custom_call.1
$region0: #{tpu_custom_call.1}
  #allocation0 [shape = 'u32[]', space=smem, size = 0x4, offset = 0x4, fixed_abs, tag = 'smem constant byte address 0x4 - core index']
  #allocation1 [shape = 'u32[72,128]{1,0:T(1,128)}', space=vmem, size = 0x9000, scoped, tag = 'internal scratch']
  %s0 = inlined_call_operand.hbm [shape: f32[2,128], index: 0, kind: input, shape index: {}]
  %s1 = inlined_call_operand.hbm [shape: f32[8,128], index: 1, kind: output, shape index: {}]
  %s2 = sld [smem:[#allocation0]]
  $region18: #{tpu_custom_call.1} parent=0
    _
  %s4 = ssub.s32 1, %s2
  %s5 = scalar_select 0, %s4, %s2
  $region1: #{tpu_custom_call.1} parent=0
    #allocation2 [shape = 'u8[1024]{0}', space=vmem, size = 0x400, scoped, tag = 'input window, operand 0, single buffered']
    #allocation3 [shape = 's32[1]{0}', space=sflag, size = 0x4, scoped, tag = 'scoped memory for tpu_custom_call.1']
    #allocation4 [shape = 's32[1]{0}', space=sflag, size = 0x4, scoped, tag = 'scoped memory for tpu_custom_call.1']
    #allocation5 [shape = 'u8[4096]{0}', space=vmem, size = 0x1000, scoped, tag = 'output window, operand 0, single buffered']
    %6 = vsyncpa [#allocation3], 0
    %7 = vsyncpa [#allocation4], 0
    // Predicated region
    $region2: #{tpu_custom_call.1} parent=1 // pred_check
      _
    $region3: #{tpu_custom_call.1} parent=1 // pred_check_branch
      %9 = sbr.rel (0) target = $region5
    $region4: #{tpu_custom_call.1} parent=1 // pred_region
      %11 = vsyncadd [#allocation3], 0
      %s13 = sshll.u32 %s0, 4
      %s14 = int_to_ptr.hbm [resolvable:$true] %s13
      %s15 = sshll.u32 [#allocation2], 4
      %s16 = int_to_ptr.vmem [resolvable:$true] %s15
      %18 = dma.hbm_to_vmem [thread:$0]  %s14, 32, %s16, [#allocation3]
    $region5: #{tpu_custom_call.1} parent=1 // pred_fallthru
      _
    // Predicated region
    $region6: #{tpu_custom_call.1} parent=1 // pred_check
      _
    $region7: #{tpu_custom_call.1} parent=1 // pred_check_branch
      %20 = sbr.rel (0) target = $region9
    $region8: #{tpu_custom_call.1} parent=1 // pred_region
      %22 = dma.done [#allocation3], 32
    $region9: #{tpu_custom_call.1} parent=1 // pred_fallthru
      _
    %v23 = vld [vmem:[#allocation2] sm:$0x1]
    %v24 = vld [vmem:[#allocation2 + $0x1] sm:$0x1]
    %v25 = vlaneseq
    %v26 = vshrl.u32 %v25, 7
    %s27 = smul.u32 0, 8
    %v28 = vstv %s27
    %v29 = vadd.s32 %v26, %v28
    %v30 = vcvt.s32.f32 %v29
    %v31 = vperm.slane %v23, 0
    %v32 = vmul.f32 %v30, %v31
    %v33 = vperm.slane %v24, 0
    %v34 = vadd.f32 %v32, %v33
    %v35 = vand.u32 2147483647, %v34
    %vm36 = vcmp.le.f32.partialorder %v35, 0.7853982
    %vm37 = vcmp.lt.s32.totalorder %v34, 0
    %v38 = vand.u32 %v34, 2139095040
    %v39 = vshrl.u32 %v38, 23
    %v40 = vsub.s32 %v39, 127
    %v41 = vand.u32 2147483647, %v34
    %v42 = vand.u32 %v41, 8388607
    %v43 = vor.u32 %v42, 8388608
    %v44 = vsub.s32 0, %v43
    %v45 = vadd.s32 %v40, 1
    %vm46 = vcmp.gt.s32.totalorder %v45, 0
    %v47 = vsel %vm46, %v45, 0
    %v48 = vshrl.u32 %v47, 5
    %v49 = vand.u32 %v47, 31
    %v50 = vsub.s32 32, %v49
    %v51 = vshrl.u32 683565275, %v50
    %v52 = vshll.u32 683565275, %v49
    %v53 = vshrl.u32 2475754826, %v50
    %v54 = vor.u32 %v52, %v53
    %v55 = vshll.u32 2475754826, %v49
    %v56 = vshrl.u32 2131351028, %v50
    %v57 = vor.u32 %v55, %v56
    %v58 = vshll.u32 2131351028, %v49
    %v59 = vshrl.u32 2102212464, %v50
    %v60 = vor.u32 %v58, %v59
    %v61 = vshll.u32 2102212464, %v49
    %v62 = vshrl.u32 920167782, %v50
    %v63 = vor.u32 %v61, %v62
    %v64 = vshll.u32 920167782, %v49
    %v65 = vshrl.u32 1326507024, %v50
    %v66 = vor.u32 %v64, %v65
    %vm67 = vcmp.lt.s32.totalorder %v48, 1
    %vm68 = vcmp.lt.s32.totalorder %v48, 2
    %vm69 = vcmp.lt.s32.totalorder %v48, 3
    %vm70 = vcmp.lt.s32.totalorder %v48, 4
    %v71 = vsel %vm67, %v51, %v54
    %v72 = vsel %vm70, %v60, 2102212464
    %v73 = vsel %vm69, %v57, %v72
    %v74 = vsel %vm68, %v71, %v73
    %v75 = vsel %vm67, %v54, %v57
    %v76 = vsel %vm70, %v63, 920167782
    %v77 = vsel %vm69, %v60, %v76
    %v78 = vsel %vm68, %v75, %v77
    %v79 = vsel %vm67, %v57, %v60
    %v80 = vsel %vm70, %v66, 1326507024
    %v81 = vsel %vm69, %v63, %v80
    %v82 = vsel %vm68, %v79, %v81
    %v83 = vshll.u32 %v43, 8
    %v84 = vand.u32 %v83, 65535
    %v85 = vshrl.u32 %v83, 16
    %v86 = vand.u32 %v82, 65535
    %v87 = vshrl.u32 %v82, 16
    %v88 = vmul.u32 %v84, %v86
    %v89 = vmul.u32 %v84, %v87
    %v90 = vmul.u32 %v85, %v86
    %v91 = vmul.u32 %v85, %v87
    %v92 = vshll.u32 %v89, 16
    %v93 = vshrl.u32 %v89, 16
    %v94 = vshll.u32 %v90, 16
    %v95 = vshrl.u32 %v90, 16
    %vm96 = vc.u32 %v88, %v92
    %v97 = vsel %vm96, 1, 0
    %v98 = vadd.s32 %v88, %v92
    %v99 = vadd.s32 %v91, %v97
    %vm100 = vc.u32 %v98, %v94
    %v101 = vsel %vm100, 1, 0
    %v102 = vadd.s32 %v98, %v94
    %v103 = vadd.s32 %v99, %v101
    %v104 = vadd.s32 %v103, %v93
    %v105 = vadd.s32 %v104, %v95
    %v106 = vand.u32 %v83, 65535
    %v107 = vshrl.u32 %v83, 16
    %v108 = vand.u32 %v78, 65535
    %v109 = vshrl.u32 %v78, 16
    %v110 = vmul.u32 %v106, %v108
    %v111 = vmul.u32 %v106, %v109
    %v112 = vmul.u32 %v107, %v108
    %v113 = vmul.u32 %v107, %v109
    %v114 = vshll.u32 %v111, 16
    %v115 = vshrl.u32 %v111, 16
    %v116 = vshll.u32 %v112, 16
    %v117 = vshrl.u32 %v112, 16
    %vm118 = vc.u32 %v110, %v114
    %v119 = vsel %vm118, 1, 0
    %v120 = vadd.s32 %v110, %v114
    %v121 = vadd.s32 %v113, %v119
    %vm122 = vc.u32 %v120, %v116
    %v123 = vsel %vm122, 1, 0
    %v124 = vadd.s32 %v120, %v116
    %v125 = vadd.s32 %v121, %v123
    %v126 = vadd.s32 %v125, %v115
    %v127 = vadd.s32 %v126, %v117
    %v128 = vmul.u32 %v83, %v74
    %v129 = vadd.s32 %v105, %v124
    %vm130 = vc.u32 %v105, %v124
    %v131 = vadd.s32 %v127, 1
    %v132 = vsel %vm130, %v131, %v127
    %v133 = vadd.s32 %v128, %v132
    %v134 = vadd.s32 %v133, 536870912
    %v135 = vshrl.u32 %v134, 30
    %v136 = vshll.u32 %v135, 30
    %v137 = vsub.s32 %v133, %v136
    %vm138 = vcmp.lt.s32.totalorder %v137, 0
    %v139 = vsub.s32 0, %v137
    %v140 = vsel %vm138, %v139, %v137
    %v141 = vclz %v140
    %v142 = vsub.s32 %v141, 2
    %vm143 = vcmp.gt.s32.totalorder 0, %v142
    %v144 = vsel %vm143, 0, %v142
    %v145 = vsub.s32 32, %v144
    %v146 = vshll.u32 %v137, %v144
    %v147 = vshrl.u32 %v129, %v145
    %v148 = vor.u32 %v146, %v147
    %v149 = vsub.s32 4294967266, %v144
    %v150 = vadd.s32 %v149, 127
    %v151 = vshll.u32 %v150, 23
    %v152 = vor.u32 4788187, %v151
    %v153 = vand.u32 2147483647, %v152
    %v155 = vcvt.s32.f32 %v148
    %v156 = vmul.f32 %v155, %v153
    %v157 = vxor.u32 %v156, 2147483648
    %v158 = vsel %vm37, %v157, %v156
    %v159 = vsub.s32 4, %v135
    %v160 = vsel %vm37, %v159, %v135
    %v161 = vsel %vm36, %v34, %v158
    %v162 = vsel %vm36, 0, %v160
    %v163 = vmul.f32 %v161, %v161
    %v164 = vmul.f32 %v163, -0.001358992
    %v165 = vadd.f32 %v164, 0.041655596
    %v166 = vmul.f32 %v163, %v165
    %v167 = vadd.f32 %v166, -0.4999988
    %v168 = vmul.f32 %v163, %v167
    %v169 = vadd.f32 1.0, %v168
    %v170 = vmul.f32 %v161, %v161
    %v171 = vmul.f32 %v170, -0.00019511016
    %v172 = vadd.f32 %v171, 0.008332121
    %v173 = vmul.f32 %v170, %v172
    %v174 = vadd.f32 %v173, -0.16666654
    %v175 = vmul.f32 %v170, %v174
    %v176 = vadd.f32 %v175, 1.0
    %v177 = vmul.f32 %v176, %v161
    %vm178 = vweird.f32 %v34
    %v179 = vadd.s32 %v162, 3
    %v180 = vand.u32 %v179, 3
    %vm181 = vcmp.lt.s32.totalorder %v180, 2
    %vm182 = vcmp.eq.s32.totalorder %v180, 0
    %v183 = vxor.u32 %v177, 2147483648
    %v184 = vsel %vm182, %v169, %v183
    %vm185 = vcmp.eq.s32.totalorder %v180, 2
    %v186 = vxor.u32 %v169, 2147483648
    %v187 = vsel %vm185, %v186, %v177
    %v188 = vsel %vm181, %v184, %v187
    %v189 = vsel %vm178, nan, %v188
    %190 = vst [vmem:[#allocation5] sm:$0xff] %v189
    // Predicated region
    $region10: #{tpu_custom_call.1} parent=1 // pred_check
      _
    $region11: #{tpu_custom_call.1} parent=1 // pred_check_branch
      %192 = sbr.rel (0) target = $region13
    $region12: #{tpu_custom_call.1} parent=1 // pred_region
      %194 = vsyncadd [#allocation4], 0
      %s196 = sshll.u32 [#allocation5], 4
      %s197 = int_to_ptr.vmem [resolvable:$true] %s196
      %s198 = sshll.u32 %s1, 4
      %s199 = int_to_ptr.hbm [resolvable:$true] %s198
      %201 = dma.vmem_to_hbm [thread:$0]  %s197, 128, %s199, [#allocation4]
    $region13: #{tpu_custom_call.1} parent=1 // pred_fallthru
      _
    // Predicated region
    $region14: #{tpu_custom_call.1} parent=1 // pred_check
      _
    $region15: #{tpu_custom_call.1} parent=1 // pred_check_branch
      %203 = sbr.rel (0) target = $region17
    $region16: #{tpu_custom_call.1} parent=1 // pred_region
      %205 = dma.done [#allocation4], 128
    $region17: #{tpu_custom_call.1} parent=1 // pred_fallthru
      _
    %206 = vsyncpa [#allocation3], 1
    %207 = vsyncpa [#allocation4], 1

</llo_original>
